<compile_context>
chip_gen: v5e
topology: v5e:2x2
jax: 0.10.0
libtpu: 0.0.40
codegen_flags: <defaults>
</compile_context>

<pallas_src>
import functools

import jax
import jax.numpy as jnp
import numpy as np
from jax.experimental import pallas as pl
from jax.experimental.pallas import tpu as pltpu

NZ = 2      # zero-dynamics state dim (z1, z2)
HID = 16    # yd hidden width
NOUT = 4    # yd output dim (matches H: (4,5))
NQ = 5      # generalized-coordinate dim (matches c: (5,))

SLAB_ROWS = HID + NOUT   # 20
SLAB_COLS = HID          # 16

# ----------------------------------------------------------------------------
# Compile-time constants (module buffers + placeholder Psi row0) and the
# precomputed inverse backing the in-kernel Sherman-Morrison solve.
# ----------------------------------------------------------------------------
_C_NP = np.array([-0.873, -0.4604, 0.0, 0.0, 0.0], dtype=np.float32)       # buffer c
_H_NP = np.zeros((4, 5), dtype=np.float32)                                  # buffer H
_H_NP[0, 1] = _H_NP[1, 2] = _H_NP[2, 3] = _H_NP[3, 4] = 1.0

# TODO(synk): Psi_Z_intermediate_1(z1, *yd_params)[:, 0] is external; its row is
# replaced by the constant placeholder row0 = c (matches the cat([c, H]) structure used
# in phi_inv and keeps A0 invertible).  With a z-dependent row0 this A0^{-1} precompute
# must move back inside the kernel (or the rank-1 update must absorb the row0 delta).
_A0_NP = np.concatenate([_C_NP[None, :], _H_NP], axis=0)                    # (5, 5)
_A0INV_NP = np.linalg.inv(_A0_NP.astype(np.float64)).astype(np.float32)     # A0^{-1}

_C0 = float(_C_NP[0])
_C1 = float(_C_NP[1])


def _pack_params(w1, b1, w2):
    """Pack yd parameters + A0^{-1} into one lane-aligned (20, 16) slab.

    rows 0:16 : col 0 = W1[0,:], col 1 = W1[1,:], col 2 = b1, cols 3:8 = A0^{-1} (5x5,
                zero-padded below row 5)
    rows 16:20: W2^T (4, 16)
    One operand -> one input DMA; with a constant index_map it stays resident in VMEM
    for every batch-grid step.
    """
    top = jnp.zeros((HID, SLAB_COLS), jnp.float32)
    top = top.at[:, 0].set(w1[0, :].astype(jnp.float32))
    top = top.at[:, 1].set(w1[1, :].astype(jnp.float32))
    top = top.at[:, 2].set(jnp.reshape(b1, (HID,)).astype(jnp.float32))
    top = top.at[0:NQ, 3:3 + NQ].set(jnp.asarray(_A0INV_NP))
    bottom = jnp.zeros((NOUT, SLAB_COLS), jnp.float32)
    bottom = bottom.at[:, :HID].set(w2.T.astype(jnp.float32))
    return jnp.concatenate([top, bottom], axis=0)                           # (20, 16)


# ----------------------------------------------------------------------------
# Fused kernel (feature-major: batch on the lane axis).
# yd hidden layer + analytic Jacobian + Psi (Sherman-Morrison) + kappa1 + zdot.
# ----------------------------------------------------------------------------
def _zero_dynamics_kernel(z_ref, p_ref, out_ref):
    z1 = z_ref[0:1, :]                        # (1, TB)
    z2 = z_ref[1:2, :]                        # (1, TB)

    w1_z1 = p_ref[0:HID, 0:1]                 # (16, 1)  column of W1^T for z1
    w1_z2 = p_ref[0:HID, 1:2]                 # (16, 1)  column of W1^T for z2
    b1 = p_ref[0:HID, 2:3]                    # (16, 1)
    a0inv = p_ref[0:NQ, 3:3 + NQ]             # (5, 5)   A0^{-1} (trace-time constant)
    w2t = p_ref[HID:HID + NOUT, :]            # (4, 16)  W2^T

    # yd hidden layer on the VPU (K=2 contraction: two broadcast FMAs) + tanh on EUP.
    h = jnp.tanh(w1_z1 * z1 + w1_z2 * z2 + b1)                    # (16, TB)
    s = 1.0 - h * h                                               # tanh' at pre-act
    # TODO(synk): ydz = W2^T h + b2 is intentionally not computed: it only feeds the
    # external sympy functions dz_2 / Psi_Z_intermediate_1, which are placeholders here.

    # Analytic Jacobian d(yd)/dz (replaces the torch autograd.grad loop):
    #   jac_j[k, b] = sum_m W2[m, k] * s[m, b] * W1[j, m]
    # Two lane-dense MXU dots (4,16)@(16,TB) -- no sublane concat / re-slice.
    jac0 = jnp.dot(w2t, s * w1_z1, preferred_element_type=jnp.float32)   # d(yd)/dz1
    jac1 = jnp.dot(w2t, s * w1_z2, preferred_element_type=jnp.float32)   # d(yd)/dz2

    # TODO(synk): kappa2 = -dz_2(z1, z2, *yd_params) is an external sympy-generated
    # robot-model function not present in the source; deterministic zero placeholder
    # (it is also z2_dot in zdot).
    kappa2 = jnp.zeros_like(z2)                                   # (1, TB)

    # Psi system solved in-register via Sherman-Morrison:
    #   M = A0 - u c^T,  A0 = [row0 ; H] (constant, placeholder row0 = c),
    #   u = [0 ; jac0],  rhs = [z2 ; jac1 * kappa2]
    #   psi = A0^{-1} rhs + (A0^{-1} u) (c^T A0^{-1} rhs) / (1 - c^T A0^{-1} u)
    # A0^{-1} is applied as (first column) * leading entry + (cols 1:5) @ tail, so the
    # [z2; ...] / [0; ...] stacks are never materialized.
    a0inv_c0 = a0inv[:, 0:1]                                      # (5, 1)
    a0inv_tail = a0inv[:, 1:NQ]                                   # (5, 4)
    psi0 = a0inv_c0 * z2 + jnp.dot(a0inv_tail, jac1 * kappa2,
                                   preferred_element_type=jnp.float32)   # A0^{-1} rhs
    au = jnp.dot(a0inv_tail, jac0, preferred_element_type=jnp.float32)   # A0^{-1} u
    # With the placeholder row0 = c:  c^T A0^{-1} = e0, so
    #   num = z2  and  den = 1 - u[0] = 1 exactly  ->  correction scale is just z2.
    # TODO(synk): once the real Psi_Z_intermediate_1 / dz_2 land, restore
    #   num = (c^T A0^{-1}) rhs, den = 1 - (c^T A0^{-1}) u  with a |den| guard
    #   (or fall back to an in-kernel 5x5 solve) -- den can vanish in general.
    psi = psi0 + au * z2                                          # (5, TB)

    # kappa1 = c^T psi ; c has only two non-zeros -> two FMAs, no reduction.
    kappa1 = _C0 * psi[0:1, :] + _C1 * psi[1:2, :]                # (1, TB)

    # zdot (feature-major) = [kappa1 ; z2_dot]; single lane-dense full-block store.
    out_ref[...] = jnp.concatenate([kappa1, kappa2], axis=0)     # (2, TB)


# ----------------------------------------------------------------------------
# ZeroDynamics.forward == zdot.  External interface stays (B, 2) -> (B, 2).
# ----------------------------------------------------------------------------
@functools.partial(jax.jit, static_argnames=("block_b",))
def zero_dynamics_forward(z, yd_params, block_b=128):
    w1, b1, w2, _b2 = yd_params
    # TODO(synk): b2 only contributes to ydz, whose sole consumers are the external
    # dz_2 / Psi_Z_intermediate_1 placeholders; it is unused until those are wired in.
    B = z.shape[0]
    slab = _pack_params(w1, b1, w2)

    # Feature-major: batch on the lane axis, padded to a multiple of the lane tile.
    zt = z.T.astype(jnp.float32)                                  # (2, B)
    bp = ((B + block_b - 1) // block_b) * block_b
    if bp != B:
        zt = jnp.pad(zt, ((0, 0), (0, bp - B)))

    out = pl.pallas_call(
        _zero_dynamics_kernel,
        grid=(bp // block_b,),
        in_specs=[
            pl.BlockSpec((NZ, block_b), lambda i: (0, i)),            # z tile per step
            pl.BlockSpec((SLAB_ROWS, SLAB_COLS), lambda i: (0, 0)),   # slab: resident
        ],
        out_specs=pl.BlockSpec((NZ, block_b), lambda i: (0, i)),
        out_shape=jax.ShapeDtypeStruct((NZ, bp), jnp.float32),
        compiler_params=pltpu.CompilerParams(
            dimension_semantics=("parallel",)),
    )(zt, slab)

    return out[:, :B].T                                           # back to (B, 2)


if __name__ == "__main__":
    key = jax.random.PRNGKey(0)
    k1, k2, k3, k4, kz = jax.random.split(key, 5)
    # deterministic yd parameters (synthetic; no checkpoint load)
    w1 = jax.random.normal(k1, (NZ, HID), jnp.float32) * 0.5
    b1 = jax.random.normal(k2, (1, HID), jnp.float32) * 0.1
    w2 = jax.random.normal(k3, (HID, NOUT), jnp.float32) * 0.5
    b2 = jax.random.normal(k4, (1, NOUT), jnp.float32) * 0.1
    yd_params = (w1, b1, w2, b2)

    z = jax.random.normal(kz, (8, NZ), jnp.float32)   # batch of zero-dynamics states (B, 2)

    zdot = jax.block_until_ready(zero_dynamics_forward(z, yd_params))

    # Pure-JAX reference: autodiff Jacobian + explicit batched 5x5 solve (the original
    # torch formulation), to validate the fused Sherman-Morrison kernel.
    def _yd_single(zv):
        return jnp.tanh(zv @ w1 + b1[0]) @ w2 + b2[0]

    jac = jax.vmap(jax.jacobian(_yd_single))(z)                       # (B, NOUT, NZ)
    c = jnp.asarray(_C_NP)
    Hm = jnp.asarray(_H_NP)
    outer = jnp.einsum('ij,k->ijk', jac[:, :, 0], c)                  # (B, 4, 5)
    row0 = jnp.broadcast_to(c[None, None, :], (z.shape[0], 1, NQ))    # placeholder row0 = c
    M = jnp.concatenate([row0, Hm[None] - outer], axis=1)             # (B, 5, 5)
    kappa2_ref = jnp.zeros((z.shape[0], 1), jnp.float32)
    rhs_ref = jnp.concatenate([z[:, 1:2], jac[:, :, 1] * kappa2_ref], axis=-1)
    psi_ref = jnp.linalg.solve(M, rhs_ref[..., None])[..., 0]
    ref = jnp.concatenate([jnp.sum(psi_ref * c, -1, keepdims=True), kappa2_ref], axis=-1)

    assert zdot.shape == (8, NZ) and zdot.dtype == jnp.float32
    assert bool(jnp.all(jnp.isfinite(zdot)))
    assert bool(jnp.allclose(zdot, ref, atol=5e-3, rtol=5e-3)), (zdot, ref)
    print("KERNEL_OK")
</pallas_src>

<mosaic_0001>
module attributes {stable_mosaic.version = 11 : i64} {
  func.func @_zero_dynamics_kernel(%arg0: i32, %arg1: memref<2x128xf32, #tpu.memory_space<vmem>>, %arg2: memref<20x16xf32, #tpu.memory_space<vmem>>, %arg3: memref<2x128xf32, #tpu.memory_space<vmem>>) attributes {dimension_semantics = [#tpu.dimension_semantics<parallel>], iteration_bounds = array<i64: 1>, scalar_prefetch = 0 : i64, scratch_operands = 0 : i64, tpu.core_type = #tpu.core_type<tc>, window_params = [{transform_indices = @transform_0, window_bounds = array<i64: 2, 128>}, {pipeline_mode = #tpu.pipeline_mode<synchronous>, transform_indices = @transform_1, window_bounds = array<i64: 20, 16>}, {transform_indices = @transform_2, window_bounds = array<i64: 2, 128>}]} {
    %c0 = arith.constant 0 : index
    %c0_0 = arith.constant 0 : index
    %0 = vector.load %arg1[%c0, %c0_0] : memref<2x128xf32, #tpu.memory_space<vmem>>, vector<1x128xf32>
    %c1 = arith.constant 1 : index
    %c0_1 = arith.constant 0 : index
    %1 = vector.load %arg1[%c1, %c0_1] : memref<2x128xf32, #tpu.memory_space<vmem>>, vector<1x128xf32>
    %c0_2 = arith.constant 0 : index
    %c0_3 = arith.constant 0 : index
    %2 = vector.load %arg2[%c0_2, %c0_3] : memref<20x16xf32, #tpu.memory_space<vmem>>, vector<16x1xf32>
    %c0_4 = arith.constant 0 : index
    %c1_5 = arith.constant 1 : index
    %3 = vector.load %arg2[%c0_4, %c1_5] : memref<20x16xf32, #tpu.memory_space<vmem>>, vector<16x1xf32>
    %c0_6 = arith.constant 0 : index
    %c2 = arith.constant 2 : index
    %4 = vector.load %arg2[%c0_6, %c2] : memref<20x16xf32, #tpu.memory_space<vmem>>, vector<16x1xf32>
    %c0_7 = arith.constant 0 : index
    %c3 = arith.constant 3 : index
    %5 = vector.load %arg2[%c0_7, %c3] : memref<20x16xf32, #tpu.memory_space<vmem>>, vector<5x5xf32>
    %c16 = arith.constant 16 : index
    %c0_8 = arith.constant 0 : index
    %6 = vector.load %arg2[%c16, %c0_8] : memref<20x16xf32, #tpu.memory_space<vmem>>, vector<4x16xf32>
    %7 = vector.broadcast %2 : vector<16x1xf32> to vector<16x128xf32>
    %8 = vector.broadcast %0 : vector<1x128xf32> to vector<16x128xf32>
    %9 = arith.mulf %7, %8 : vector<16x128xf32>
    %10 = vector.broadcast %3 : vector<16x1xf32> to vector<16x128xf32>
    %11 = vector.broadcast %1 : vector<1x128xf32> to vector<16x128xf32>
    %12 = arith.mulf %10, %11 : vector<16x128xf32>
    %13 = arith.addf %9, %12 : vector<16x128xf32>
    %14 = vector.broadcast %4 : vector<16x1xf32> to vector<16x128xf32>
    %15 = arith.addf %13, %14 : vector<16x128xf32>
    %16 = math.tanh %15 : vector<16x128xf32>
    %17 = arith.mulf %16, %16 : vector<16x128xf32>
    %cst = arith.constant 1.000000e+00 : f32
    %18 = vector.broadcast %cst : f32 to vector<16x128xf32>
    %19 = arith.subf %18, %17 : vector<16x128xf32>
    %20 = vector.broadcast %2 : vector<16x1xf32> to vector<16x128xf32>
    %21 = arith.mulf %19, %20 : vector<16x128xf32>
    %cst_9 = arith.constant dense<0.000000e+00> : vector<4x128xf32>
    %22 = tpu.matmul %6, %21, %cst_9 {dimension_numbers = #tpu.dot_dimension_numbers<[1], [0], [0], [1], [0, 0, 1, 1], [], []>} : vector<4x16xf32>, vector<16x128xf32>, vector<4x128xf32> -> vector<4x128xf32>
    %23 = vector.broadcast %3 : vector<16x1xf32> to vector<16x128xf32>
    %24 = arith.mulf %19, %23 : vector<16x128xf32>
    %cst_10 = arith.constant dense<0.000000e+00> : vector<4x128xf32>
    %25 = tpu.matmul %6, %24, %cst_10 {dimension_numbers = #tpu.dot_dimension_numbers<[1], [0], [0], [1], [0, 0, 1, 1], [], []>} : vector<4x16xf32>, vector<16x128xf32>, vector<4x128xf32> -> vector<4x128xf32>
    %cst_11 = arith.constant 0.000000e+00 : f32
    %26 = vector.broadcast %cst_11 : f32 to vector<1x128xf32>
    %27 = vector.extract_strided_slice %5 {offsets = [0, 0], sizes = [5, 1], strides = [1, 1]} : vector<5x5xf32> to vector<5x1xf32>
    %28 = vector.extract_strided_slice %5 {offsets = [0, 1], sizes = [5, 4], strides = [1, 1]} : vector<5x5xf32> to vector<5x4xf32>
    %29 = vector.broadcast %27 : vector<5x1xf32> to vector<5x128xf32>
    %30 = vector.broadcast %1 : vector<1x128xf32> to vector<5x128xf32>
    %31 = arith.mulf %29, %30 : vector<5x128xf32>
    %32 = vector.broadcast %26 : vector<1x128xf32> to vector<4x128xf32>
    %33 = arith.mulf %25, %32 : vector<4x128xf32>
    %cst_12 = arith.constant dense<0.000000e+00> : vector<5x128xf32>
    %34 = tpu.matmul %28, %33, %cst_12 {dimension_numbers = #tpu.dot_dimension_numbers<[1], [0], [0], [1], [0, 0, 1, 1], [], []>} : vector<5x4xf32>, vector<4x128xf32>, vector<5x128xf32> -> vector<5x128xf32>
    %35 = arith.addf %31, %34 : vector<5x128xf32>
    %cst_13 = arith.constant dense<0.000000e+00> : vector<5x128xf32>
    %36 = tpu.matmul %28, %22, %cst_13 {dimension_numbers = #tpu.dot_dimension_numbers<[1], [0], [0], [1], [0, 0, 1, 1], [], []>} : vector<5x4xf32>, vector<4x128xf32>, vector<5x128xf32> -> vector<5x128xf32>
    %37 = vector.broadcast %1 : vector<1x128xf32> to vector<5x128xf32>
    %38 = arith.mulf %36, %37 : vector<5x128xf32>
    %39 = arith.addf %35, %38 : vector<5x128xf32>
    %40 = vector.extract_strided_slice %39 {offsets = [0, 0], sizes = [1, 128], strides = [1, 1]} : vector<5x128xf32> to vector<1x128xf32>
    %cst_14 = arith.constant -8.730000e-01 : f32
    %41 = vector.broadcast %cst_14 : f32 to vector<1x128xf32>
    %42 = arith.mulf %41, %40 : vector<1x128xf32>
    %43 = vector.extract_strided_slice %39 {offsets = [1, 0], sizes = [1, 128], strides = [1, 1]} : vector<5x128xf32> to vector<1x128xf32>
    %cst_15 = arith.constant -4.604000e-01 : f32
    %44 = vector.broadcast %cst_15 : f32 to vector<1x128xf32>
    %45 = arith.mulf %44, %43 : vector<1x128xf32>
    %46 = arith.addf %42, %45 : vector<1x128xf32>
    %47 = tpu.concatenate %46, %26 in 0 : vector<1x128xf32>, vector<1x128xf32> -> vector<2x128xf32>
    %c0_16 = arith.constant 0 : index
    %c0_17 = arith.constant 0 : index
    %48 = vector.load %arg3[%c0_16, %c0_17] : memref<2x128xf32, #tpu.memory_space<vmem>>, vector<2x128xf32>
    tpu.vector_store %arg3[%c0_16, %c0_17], %47 {strides = array<i32>} : memref<2x128xf32, #tpu.memory_space<vmem>>, vector<2x128xf32>,
    return
  }
  func.func @transform_0(%arg0: i32) -> (i32, i32) {
    %c0_i32 = arith.constant 0 : i32
    %c0_i32_0 = arith.constant 0 : i32
    return %c0_i32, %arg0 : i32, i32
  }
  func.func @transform_1(%arg0: i32) -> (i32, i32) {
    %c0_i32 = arith.constant 0 : i32
    %c0_i32_0 = arith.constant 0 : i32
    %c0_i32_1 = arith.constant 0 : i32
    return %c0_i32, %c0_i32_0 : i32, i32
  }
  func.func @transform_2(%arg0: i32) -> (i32, i32) {
    %c0_i32 = arith.constant 0 : i32
    %c0_i32_0 = arith.constant 0 : i32
    return %c0_i32, %arg0 : i32, i32
  }
}

</mosaic_0001>

<llo_original>
// kernel: zero_dynamics_forward.1
$region0: #{zero_dynamics_forward.1}
  #allocation0 [shape = 'u32[]', space=smem, size = 0x4, offset = 0x4, fixed_abs, tag = 'smem constant byte address 0x4 - core index']
  #allocation1 [shape = 'u32[72,128]{1,0:T(1,128)}', space=vmem, size = 0x9000, scoped, tag = 'internal scratch']
  %s0 = inlined_call_operand.vmem [shape: f32[2,128], index: 0, kind: input, shape index: {}]
  %s1 = inlined_call_operand.vmem [shape: f32[20,16], index: 1, kind: input, shape index: {}]
  %s2 = inlined_call_operand.vmem [shape: f32[2,128], index: 2, kind: output, shape index: {}]
  %s3 = sld [smem:[#allocation0]]
  $region18: #{zero_dynamics_forward.1} parent=0
    _
  %s5 = ssub.s32 1, %s3
  %s6 = scalar_select 0, %s5, %s3
  // Predicated region
  $region2: #{zero_dynamics_forward.1} parent=0 // pred_check
    _
  $region3: #{zero_dynamics_forward.1} parent=0 // pred_check_branch
    %8 = sbr.rel (0) target = $region5
  $region4: #{zero_dynamics_forward.1} parent=0 // pred_region
    _
  $region5: #{zero_dynamics_forward.1} parent=0 // pred_fallthru
    _
  // Predicated region
  $region6: #{zero_dynamics_forward.1} parent=0 // pred_check
    _
  $region7: #{zero_dynamics_forward.1} parent=0 // pred_check_branch
    %10 = sbr.rel (0) target = $region9
  $region8: #{zero_dynamics_forward.1} parent=0 // pred_region
    _
  $region9: #{zero_dynamics_forward.1} parent=0 // pred_fallthru
    _
  %v11 = vld [vmem:[%s0] sm:$0x1]
  %v12 = vld [vmem:[%s0 + $0x1] sm:$0x1]
  %v13 = vld [vmem:[%s1] sm:$0xff]
  %v14 = vld [vmem:[%s1 + $0x8] sm:$0xff]
  %v15 = vld [vmem:[%s1] sm:$0x1f]
  %v16 = vld [vmem:[%s1 + $0x10] sm:$0xf]
  %18 = vset.pattern.permute.xlu0 0
  %19 = vperm.xlu0 %18, %v13
  %v20 = vpop.permute.xlu0 %19
  %23 = vset.pattern.permute.xlu0 0
  %24 = vperm.xlu0 %23, %v14
  %v25 = vpop.permute.xlu0 %24
  %v27 = vperm.slane %v11, 0
  %v28 = vmul.f32 %v20, %v27
  %v29 = vmul.f32 %v25, %v27
  %30 = vset.pattern.permute.xlu0 1
  %31 = vperm.xlu0 %30, %v13
  %v32 = vpop.permute.xlu0 %31
  %34 = vset.pattern.permute.xlu0 1
  %35 = vperm.xlu0 %34, %v14
  %v36 = vpop.permute.xlu0 %35
  %v38 = vperm.slane %v12, 0
  %v39 = vmul.f32 %v32, %v38
  %v40 = vmul.f32 %v36, %v38
  %v41 = vadd.f32 %v28, %v39
  %v42 = vadd.f32 %v29, %v40
  %43 = vset.pattern.permute.xlu0 2
  %44 = vperm.xlu0 %43, %v13
  %v45 = vpop.permute.xlu0 %44
  %47 = vset.pattern.permute.xlu0 2
  %48 = vperm.xlu0 %47, %v14
  %v49 = vpop.permute.xlu0 %48
  %v51 = vadd.f32 %v41, %v45
  %v52 = vadd.f32 %v42, %v49
  %v53 = vtanh.pop %v51
  %v54 = vtanh.pop %v52
  %v55 = vmul.f32 %v53, %v53
  %v56 = vmul.f32 %v54, %v54
  %v57 = vsub.f32 1.0, %v55
  %v58 = vsub.f32 1.0, %v56
  %v59 = vmul.f32 %v57, %v20
  %v60 = vmul.f32 %v58, %v25
  %vm61 = vcmask 130048
  %v63 = vsel %vm61, %v16, 0
  %65 = vmatpush.msra.mxu0 0.0
  %66 = vmatpush.msra.mxu0 0.0
  %67 = vmatpush.msra.mxu0 0.0
  %68 = vmatpush.msra.mxu0 0.0
  %69 = vmatpush.msra.mxu0 0.0
  %70 = vmatpush.msra.mxu0 0.0
  %71 = vmatpush.msra.mxu0 0.0
  %72 = vmatpush.msra.mxu0 0.0
  %73 = vmatpush.msra.mxu0 0.0
  %74 = vmatpush.msra.mxu0 0.0
  %75 = vmatpush.msra.mxu0 0.0
  %76 = vmatpush.msra.mxu0 0.0
  %77 = vmatpush.msra.mxu0 0.0
  %78 = vmatpush.msra.mxu0 0.0
  %79 = vmatpush.msra.mxu0 %v60
  %80 = vmatpush.msra.mxu0 %v59
  %81 = vmatmul.f32.gmra.mxu0 %v63
  %v82 = vpop.f32.mrf.mxu0
  %v83 = vadd.f32 0.0, %v82
  %84 = vdwg.mxu0
  %v85 = vmul.f32 %v57, %v32
  %v86 = vmul.f32 %v58, %v36
  %87 = vmatpush.msra.mxu0 0.0
  %88 = vmatpush.msra.mxu0 0.0
  %89 = vmatpush.msra.mxu0 0.0
  %90 = vmatpush.msra.mxu0 0.0
  %91 = vmatpush.msra.mxu0 0.0
  %92 = vmatpush.msra.mxu0 0.0
  %93 = vmatpush.msra.mxu0 0.0
  %94 = vmatpush.msra.mxu0 0.0
  %95 = vmatpush.msra.mxu0 0.0
  %96 = vmatpush.msra.mxu0 0.0
  %97 = vmatpush.msra.mxu0 0.0
  %98 = vmatpush.msra.mxu0 0.0
  %99 = vmatpush.msra.mxu0 0.0
  %100 = vmatpush.msra.mxu0 0.0
  %101 = vmatpush.msra.mxu0 %v86
  %102 = vmatpush.msra.mxu0 %v85
  %103 = vmatmul.f32.gmra.mxu0 %v63
  %v104 = vpop.f32.mrf.mxu0
  %v105 = vadd.f32 0.0, %v104
  %106 = vdwg.mxu0
  %108 = vset.pattern.permute.xlu0 3
  %109 = vperm.xlu0 %108, %v15
  %v110 = vpop.permute.xlu0 %109
  %v112 = vmul.f32 %v110, %v38
  %v113 = vmul.f32 %v105, 0.0
  %114 = vrot.lane.b32.xlu0 %v15, 124
  %v115 = vpop.permute.xlu0 %114
  %vm116 = vcmask 31744
  %v117 = vsel %vm116, %v115, 0
  %vm119 = vcmask 1043456
  %v121 = vsel %vm119, %v113, 0
  %123 = vmatpush.msra.mxu0 0.0
  %124 = vmatpush.msra.mxu0 0.0
  %125 = vmatpush.msra.mxu0 0.0
  %126 = vmatpush.msra.mxu0 0.0
  %127 = vmatpush.msra.mxu0 0.0
  %128 = vmatpush.msra.mxu0 0.0
  %129 = vmatpush.msra.mxu0 0.0
  %130 = vmatpush.msra.mxu0 0.0
  %131 = vmatpush.msra.mxu0 0.0
  %132 = vmatpush.msra.mxu0 0.0
  %133 = vmatpush.msra.mxu0 0.0
  %134 = vmatpush.msra.mxu0 0.0
  %135 = vmatpush.msra.mxu0 0.0
  %136 = vmatpush.msra.mxu0 0.0
  %137 = vmatpush.msra.mxu0 0.0
  %138 = vmatpush.msra.mxu0 %v121
  %139 = vmatmul.f32.gmra.mxu0 %v117
  %v140 = vpop.f32.mrf.mxu0
  %v141 = vadd.f32 0.0, %v140
  %142 = vdwg.mxu0
  %v143 = vadd.f32 %v112, %v141
  %v145 = vsel %vm119, %v83, 0
  %147 = vmatpush.msra.mxu0 0.0
  %148 = vmatpush.msra.mxu0 0.0
  %149 = vmatpush.msra.mxu0 0.0
  %150 = vmatpush.msra.mxu0 0.0
  %151 = vmatpush.msra.mxu0 0.0
  %152 = vmatpush.msra.mxu0 0.0
  %153 = vmatpush.msra.mxu0 0.0
  %154 = vmatpush.msra.mxu0 0.0
  %155 = vmatpush.msra.mxu0 0.0
  %156 = vmatpush.msra.mxu0 0.0
  %157 = vmatpush.msra.mxu0 0.0
  %158 = vmatpush.msra.mxu0 0.0
  %159 = vmatpush.msra.mxu0 0.0
  %160 = vmatpush.msra.mxu0 0.0
  %161 = vmatpush.msra.mxu0 0.0
  %162 = vmatpush.msra.mxu0 %v145
  %163 = vmatmul.f32.gmra.mxu0 %v117
  %v164 = vpop.f32.mrf.mxu0
  %v165 = vadd.f32 0.0, %v164
  %166 = vdwg.mxu0
  %v167 = vmul.f32 %v165, %v38
  %v168 = vadd.f32 %v143, %v167
  %v169 = vmul.f32 %v168, -0.873
  %v170 = vmul.f32 %v168, -0.4604
  %v172 = vrot.slane %v170, 1
  %v174 = vadd.f32 %v169, %v172
  %vm175 = vcmask 1040384
  %v176 = vsel %vm175, %v174, 0.0
  %177 = vst [vmem:[%s2] sm:$0x3] %v176
  // Predicated region
  $region10: #{zero_dynamics_forward.1} parent=0 // pred_check
    _
  $region11: #{zero_dynamics_forward.1} parent=0 // pred_check_branch
    %179 = sbr.rel (0) target = $region13
  $region12: #{zero_dynamics_forward.1} parent=0 // pred_region
    _
  $region13: #{zero_dynamics_forward.1} parent=0 // pred_fallthru
    _
  // Predicated region
  $region14: #{zero_dynamics_forward.1} parent=0 // pred_check
    _
  $region15: #{zero_dynamics_forward.1} parent=0 // pred_check_branch
    %181 = sbr.rel (0) target = $region17
  $region16: #{zero_dynamics_forward.1} parent=0 // pred_region
    _
  $region17: #{zero_dynamics_forward.1} parent=0 // pred_fallthru
    _

</llo_original>
